<compile_context>
chip_gen: v6e
topology: v6e:2x2x1
jax: 0.10.0
libtpu: 0.0.40
codegen_flags: <defaults>
</compile_context>

<pallas_src>
import jax
import jax.numpy as jnp
from jax.experimental import pallas as pl
from jax.experimental.pallas import tpu as pltpu


def crf_forward_kernel(emis_ref, lens_ref, et_ref, cmax_ref, start_ref, stop_ref,
                       fwd_ref, alpha_ref):
    """Forward algorithm (log-partition) for one (batch_tile, seq_chunk) grid cell.

    emis_ref : [TS, TB, T] emissions chunk (seq-major -> per-step contiguous load)
    lens_ref : [TB, 1] int32 sentence lengths
    et_ref   : [T, T]  exp(trans - col_max)   (precomputed in wrapper)
    cmax_ref : [1, T]  per-column max of trans
    start_ref, stop_ref : [1, T]
    fwd_ref  : [TB, 1] per-row log-partition, written at the last seq chunk
    alpha_ref: [TB, T] forward log-alphas, persistent VMEM scratch across seq chunks
    """
    TS = emis_ref.shape[0]
    s = pl.program_id(1)
    base = s * TS

    et = et_ref[...]        # [T, T]
    cmax = cmax_ref[...]    # [1, T]
    lens = lens_ref[...]    # [TB, 1]

    def step(lt, carry):
        alpha = alpha_ref[...]                                     # [TB, T]
        emit = emis_ref[lt]                                        # [TB, T]
        # logsumexp over previous tag, exp-space via MXU:
        #   lse_j = m + cmax_j + log( sum_i exp(alpha_i - m) * exp(trans_ij - cmax_j) )
        m = jnp.max(alpha, axis=-1, keepdims=True)                 # [TB, 1]
        p = jnp.exp(alpha - m)                                     # [TB, T]
        acc = jnp.dot(p, et, preferred_element_type=jnp.float32)   # [TB, T]  (MXU)
        new_alpha = m + cmax + jnp.log(acc) + emit                 # [TB, T]
        active = (base + lt) < lens                                # [TB, 1]
        alpha_ref[...] = jnp.where(active, new_alpha, alpha)
        return carry

    @pl.when(s == 0)
    def _():
        alpha_ref[...] = emis_ref[0] + start_ref[...]
        jax.lax.fori_loop(1, TS, step, 0, unroll=True)

    @pl.when(s != 0)
    def _():
        jax.lax.fori_loop(0, TS, step, 0, unroll=True)

    @pl.when(s == pl.num_programs(1) - 1)
    def _():
        term = alpha_ref[...] + stop_ref[...]                      # [TB, T]
        m = jnp.max(term, axis=-1, keepdims=True)
        fwd_ref[...] = m + jnp.log(jnp.sum(jnp.exp(term - m), axis=-1, keepdims=True))


def _crf_forward_scores(emissions, sent_len, transitions, start_trans, stop_trans,
                        *, batch_tile=8, seq_tile=4):
    """Per-sequence log-partition via the Pallas kernel. Returns [B] f32."""
    B, S, T = emissions.shape
    TB, TS = batch_tile, seq_tile
    NB, NS = pl.cdiv(B, TB), pl.cdiv(S, TS)
    Bp, Sp = NB * TB, NS * TS

    emis = jnp.pad(emissions.astype(jnp.float32), ((0, Bp - B), (0, Sp - S), (0, 0)))
    emis = jnp.transpose(emis, (1, 0, 2))                           # [Sp, Bp, T] seq-major
    lens = jnp.pad(sent_len.astype(jnp.int32), (0, Bp - B)).reshape(Bp, 1)

    trans = transitions.astype(jnp.float32)
    cmax = jnp.max(trans, axis=0, keepdims=True)                    # [1, T]
    et = jnp.exp(trans - cmax)                                      # [T, T]
    start2 = start_trans.astype(jnp.float32).reshape(1, T)
    stop2 = stop_trans.astype(jnp.float32).reshape(1, T)

    fwd = pl.pallas_call(
        crf_forward_kernel,
        out_shape=jax.ShapeDtypeStruct((Bp, 1), jnp.float32),
        grid_spec=pltpu.PrefetchScalarGridSpec(
            num_scalar_prefetch=0,
            grid=(NB, NS),
            in_specs=[
                pl.BlockSpec((TS, TB, T), lambda b, s: (s, b, 0)),  # emissions chunk
                pl.BlockSpec((TB, 1), lambda b, s: (b, 0)),         # lengths
                pl.BlockSpec((T, T), lambda b, s: (0, 0)),          # exp(trans - cmax)
                pl.BlockSpec((1, T), lambda b, s: (0, 0)),          # cmax
                pl.BlockSpec((1, T), lambda b, s: (0, 0)),          # start
                pl.BlockSpec((1, T), lambda b, s: (0, 0)),          # stop
            ],
            out_specs=pl.BlockSpec((TB, 1), lambda b, s: (b, 0)),
            scratch_shapes=[pltpu.VMEM((TB, T), jnp.float32)],      # alpha
        ),
        compiler_params=pltpu.CompilerParams(
            dimension_semantics=("parallel", "arbitrary"),
            vmem_limit_bytes=32 * 1024 * 1024),
    )(emis, lens, et, cmax, start2, stop2)
    return fwd[:B, 0]


def _gold_scores(emissions, labels, sent_len, trans, start, stop):
    """Labeled-path score per sequence (O(B*S) gathers, done in plain JAX)."""
    B, S, T = emissions.shape
    e = emissions.astype(jnp.float32)
    y = labels.astype(jnp.int32)
    L = sent_len.astype(jnp.int32)[:, None]                         # [B, 1]
    t_idx = jnp.arange(S)[None, :]                                  # [1, S]

    emit_sc = jnp.take_along_axis(e, y[..., None], axis=-1)[..., 0]  # [B, S]
    emit_mask = (t_idx == 0) | (t_idx < L)                          # t=0 always counted
    trans_sc = trans[y[:, :-1], y[:, 1:]]                           # [B, S-1]
    trans_mask = t_idx[:, 1:] < L
    last_lbl = jnp.take_along_axis(y, jnp.clip(L - 1, 0, S - 1), axis=-1)[:, 0]
    return (start[y[:, 0]]
            + jnp.sum(jnp.where(emit_mask, emit_sc, 0.0), axis=-1)
            + jnp.sum(jnp.where(trans_mask, trans_sc, 0.0), axis=-1)
            + stop[last_lbl])


def sequence_criteria_crf(emissions, labels, sent_len, transitions, start_trans, stop_trans,
                          *, batch_tile=8, seq_tile=4):
    """emissions: [B,S,T] f32, labels: [B,S] i32, sent_len: [B] i32 -> scalar loss."""
    fwd = _crf_forward_scores(emissions, sent_len, transitions, start_trans, stop_trans,
                              batch_tile=batch_tile, seq_tile=seq_tile)
    gold = _gold_scores(emissions, labels, sent_len,
                        transitions.astype(jnp.float32),
                        start_trans.astype(jnp.float32),
                        stop_trans.astype(jnp.float32))
    return (jnp.sum(fwd) - jnp.sum(gold)) / jnp.sum(sent_len.astype(jnp.float32))


def crf_nll_ref(emissions, labels, sent_len, trans, start, stop):
    """Pure-JAX reference (same semantics as the original module)."""
    B, S, T = emissions.shape

    def per_b(e, y, L):
        alpha = start + e[0]
        gold = start[y[0]] + e[0, y[0]]
        last = y[0]
        for t in range(1, S):
            new_alpha = jax.scipy.special.logsumexp(alpha[:, None] + trans, axis=0) + e[t]
            active = t < L
            alpha = jnp.where(active, new_alpha, alpha)
            gold = gold + jnp.where(active, trans[y[t - 1], y[t]] + e[t, y[t]], 0.0)
            last = jnp.where(active, y[t], last)
        fwd = jax.scipy.special.logsumexp(alpha + stop)
        return fwd, gold + stop[last]

    fwds, golds = jax.vmap(per_b)(emissions, labels, sent_len)
    return (jnp.sum(fwds) - jnp.sum(golds)) / jnp.sum(sent_len.astype(jnp.float32))


if __name__ == "__main__":
    B, S, T = 2, 8, 8  # batch, seq, num_tags

    key = jax.random.PRNGKey(0)
    k_emis, k_lbl, k_trans, k_start, k_stop = jax.random.split(key, 5)

    # top_layer_output (emissions), labels, sent_len — the module's forward inputs
    top_layer_output = jax.random.normal(k_emis, (B, S, T), dtype=jnp.float32)
    labels = jax.random.randint(k_lbl, (B, S), 0, T, dtype=jnp.int32)
    sent_len = jnp.array([8, 5], dtype=jnp.int32)

    # deterministic CRF parameters (the `model`'s transition tables)
    transitions = 0.1 * jax.random.normal(k_trans, (T, T), dtype=jnp.float32)
    start_trans = 0.1 * jax.random.normal(k_start, (T,), dtype=jnp.float32)
    stop_trans = 0.1 * jax.random.normal(k_stop, (T,), dtype=jnp.float32)

    loss = jax.jit(sequence_criteria_crf)(
        top_layer_output, labels, sent_len, transitions, start_trans, stop_trans)
    loss = jax.block_until_ready(loss)

    ref = crf_nll_ref(top_layer_output, labels, sent_len, transitions, start_trans, stop_trans)
    assert jnp.allclose(loss, ref, rtol=1e-3, atol=1e-3), (loss, ref)

    print("KERNEL_OK")
</pallas_src>

<mosaic_0001>
module attributes {stable_mosaic.version = 11 : i64} {
  func.func @crf_forward_kernel(%arg0: i32, %arg1: i32, %arg2: memref<4x8x8xf32, #tpu.memory_space<vmem>>, %arg3: memref<8x1xi32, #tpu.memory_space<vmem>>, %arg4: memref<8x8xf32, #tpu.memory_space<vmem>>, %arg5: memref<1x8xf32, #tpu.memory_space<vmem>>, %arg6: memref<1x8xf32, #tpu.memory_space<vmem>>, %arg7: memref<1x8xf32, #tpu.memory_space<vmem>>, %arg8: memref<8x1xf32, #tpu.memory_space<vmem>>, %arg9: memref<8x8xf32, #tpu.memory_space<vmem>>) attributes {dimension_semantics = [#tpu.dimension_semantics<parallel>, #tpu.dimension_semantics<arbitrary>], iteration_bounds = array<i64: 1, 2>, scalar_prefetch = 0 : i64, scratch_operands = 1 : i64, tpu.core_type = #tpu.core_type<tc>, window_params = [{transform_indices = @transform_0, window_bounds = array<i64: 4, 8, 8>}, {transform_indices = @transform_1, window_bounds = array<i64: 8, 1>}, {pipeline_mode = #tpu.pipeline_mode<synchronous>, transform_indices = @transform_2, window_bounds = array<i64: 8, 8>}, {pipeline_mode = #tpu.pipeline_mode<synchronous>, transform_indices = @transform_3, window_bounds = array<i64: 1, 8>}, {pipeline_mode = #tpu.pipeline_mode<synchronous>, transform_indices = @transform_4, window_bounds = array<i64: 1, 8>}, {pipeline_mode = #tpu.pipeline_mode<synchronous>, transform_indices = @transform_5, window_bounds = array<i64: 1, 8>}, {transform_indices = @transform_6, window_bounds = array<i64: 8, 1>}]} {
    %c4_i32 = arith.constant 4 : i32
    %0 = arith.muli %arg1, %c4_i32 : i32
    %c0 = arith.constant 0 : index
    %c0_0 = arith.constant 0 : index
    %1 = vector.load %arg4[%c0, %c0_0] : memref<8x8xf32, #tpu.memory_space<vmem>>, vector<8x8xf32>
    %c0_1 = arith.constant 0 : index
    %c0_2 = arith.constant 0 : index
    %2 = vector.load %arg5[%c0_1, %c0_2] : memref<1x8xf32, #tpu.memory_space<vmem>>, vector<1x8xf32>
    %c0_3 = arith.constant 0 : index
    %c0_4 = arith.constant 0 : index
    %3 = vector.load %arg3[%c0_3, %c0_4] : memref<8x1xi32, #tpu.memory_space<vmem>>, vector<8x1xi32>
    %c0_i32 = arith.constant 0 : i32
    %4 = arith.cmpi eq, %arg1, %c0_i32 : i32
    %5 = arith.extui %4 : i1 to i32
    %c0_i32_5 = arith.constant 0 : i32
    %6 = arith.cmpi ne, %5, %c0_i32_5 : i32
    scf.if %6 {
      %c0_9 = arith.constant 0 : index
      %c0_10 = arith.constant 0 : index
      %c0_11 = arith.constant 0 : index
      %13 = vector.load %arg2[%c0_9, %c0_10, %c0_11] : memref<4x8x8xf32, #tpu.memory_space<vmem>>, vector<1x8x8xf32>
      %14 = vector.shape_cast %13 : vector<1x8x8xf32> to vector<8x8xf32>
      %c0_12 = arith.constant 0 : index
      %c0_13 = arith.constant 0 : index
      %15 = vector.load %arg6[%c0_12, %c0_13] : memref<1x8xf32, #tpu.memory_space<vmem>>, vector<1x8xf32>
      %16 = vector.broadcast %15 : vector<1x8xf32> to vector<8x8xf32>
      %17 = arith.addf %14, %16 : vector<8x8xf32>
      %c0_14 = arith.constant 0 : index
      %c0_15 = arith.constant 0 : index
      %18 = vector.load %arg9[%c0_14, %c0_15] : memref<8x8xf32, #tpu.memory_space<vmem>>, vector<8x8xf32>
      tpu.vector_store %arg9[%c0_14, %c0_15], %17 {strides = array<i32>} : memref<8x8xf32, #tpu.memory_space<vmem>>, vector<8x8xf32>,
      %c1_i32_16 = arith.constant 1 : i32
      %c0_17 = arith.constant 0 : index
      %c0_18 = arith.constant 0 : index
      %19 = vector.load %arg9[%c0_17, %c0_18] : memref<8x8xf32, #tpu.memory_space<vmem>>, vector<8x8xf32>
      %20 = arith.index_cast %c1_i32_16 : i32 to index
      %c0_19 = arith.constant 0 : index
      %c0_20 = arith.constant 0 : index
      %21 = vector.load %arg2[%20, %c0_19, %c0_20] : memref<4x8x8xf32, #tpu.memory_space<vmem>>, vector<1x8x8xf32>
      %22 = vector.shape_cast %21 : vector<1x8x8xf32> to vector<8x8xf32>
      %cst = arith.constant dense<0xFF800000> : vector<8xf32>
      %23 = vector.multi_reduction <maximumf>, %19, %cst [1] : vector<8x8xf32> to vector<8xf32>
      %24 = vector.shape_cast %23 : vector<8xf32> to vector<8x1xf32>
      %25 = vector.broadcast %24 : vector<8x1xf32> to vector<8x8xf32>
      %26 = arith.subf %19, %25 : vector<8x8xf32>
      %27 = math.exp %26 : vector<8x8xf32>
      %cst_21 = arith.constant dense<0.000000e+00> : vector<8x8xf32>
      %28 = tpu.matmul %27, %1, %cst_21 {dimension_numbers = #tpu.dot_dimension_numbers<[1], [0], [0], [1], [0, 0, 1, 1], [], []>} : vector<8x8xf32>, vector<8x8xf32>, vector<8x8xf32> -> vector<8x8xf32>
      %29 = vector.broadcast %24 : vector<8x1xf32> to vector<8x8xf32>
      %30 = vector.broadcast %2 : vector<1x8xf32> to vector<8x8xf32>
      %31 = arith.addf %29, %30 : vector<8x8xf32>
      %32 = math.log %28 : vector<8x8xf32>
      %33 = arith.addf %31, %32 : vector<8x8xf32>
      %34 = arith.addf %33, %22 : vector<8x8xf32>
      %35 = arith.addi %0, %c1_i32_16 : i32
      %36 = vector.broadcast %35 : i32 to vector<8x1xi32>
      %37 = arith.cmpi slt, %36, %3 : vector<8x1xi32>
      %38 = vector.shape_cast %37 : vector<8x1xi1> to vector<8x1xi1>
      %39 = vector.broadcast %38 : vector<8x1xi1> to vector<8x8xi1>
      %40 = arith.select %39, %34, %19 : vector<8x8xi1>, vector<8x8xf32>
      %c0_22 = arith.constant 0 : index
      %c0_23 = arith.constant 0 : index
      %41 = vector.load %arg9[%c0_22, %c0_23] : memref<8x8xf32, #tpu.memory_space<vmem>>, vector<8x8xf32>
      tpu.vector_store %arg9[%c0_22, %c0_23], %40 {strides = array<i32>} : memref<8x8xf32, #tpu.memory_space<vmem>>, vector<8x8xf32>,
      %c2_i32 = arith.constant 2 : i32
      %c0_24 = arith.constant 0 : index
      %c0_25 = arith.constant 0 : index
      %42 = vector.load %arg9[%c0_24, %c0_25] : memref<8x8xf32, #tpu.memory_space<vmem>>, vector<8x8xf32>
      %43 = arith.index_cast %c2_i32 : i32 to index
      %c0_26 = arith.constant 0 : index
      %c0_27 = arith.constant 0 : index
      %44 = vector.load %arg2[%43, %c0_26, %c0_27] : memref<4x8x8xf32, #tpu.memory_space<vmem>>, vector<1x8x8xf32>
      %45 = vector.shape_cast %44 : vector<1x8x8xf32> to vector<8x8xf32>
      %cst_28 = arith.constant dense<0xFF800000> : vector<8xf32>
      %46 = vector.multi_reduction <maximumf>, %42, %cst_28 [1] : vector<8x8xf32> to vector<8xf32>
      %47 = vector.shape_cast %46 : vector<8xf32> to vector<8x1xf32>
      %48 = vector.broadcast %47 : vector<8x1xf32> to vector<8x8xf32>
      %49 = arith.subf %42, %48 : vector<8x8xf32>
      %50 = math.exp %49 : vector<8x8xf32>
      %cst_29 = arith.constant dense<0.000000e+00> : vector<8x8xf32>
      %51 = tpu.matmul %50, %1, %cst_29 {dimension_numbers = #tpu.dot_dimension_numbers<[1], [0], [0], [1], [0, 0, 1, 1], [], []>} : vector<8x8xf32>, vector<8x8xf32>, vector<8x8xf32> -> vector<8x8xf32>
      %52 = vector.broadcast %47 : vector<8x1xf32> to vector<8x8xf32>
      %53 = vector.broadcast %2 : vector<1x8xf32> to vector<8x8xf32>
      %54 = arith.addf %52, %53 : vector<8x8xf32>
      %55 = math.log %51 : vector<8x8xf32>
      %56 = arith.addf %54, %55 : vector<8x8xf32>
      %57 = arith.addf %56, %45 : vector<8x8xf32>
      %58 = arith.addi %0, %c2_i32 : i32
      %59 = vector.broadcast %58 : i32 to vector<8x1xi32>
      %60 = arith.cmpi slt, %59, %3 : vector<8x1xi32>
      %61 = vector.shape_cast %60 : vector<8x1xi1> to vector<8x1xi1>
      %62 = vector.broadcast %61 : vector<8x1xi1> to vector<8x8xi1>
      %63 = arith.select %62, %57, %42 : vector<8x8xi1>, vector<8x8xf32>
      %c0_30 = arith.constant 0 : index
      %c0_31 = arith.constant 0 : index
      %64 = vector.load %arg9[%c0_30, %c0_31] : memref<8x8xf32, #tpu.memory_space<vmem>>, vector<8x8xf32>
      tpu.vector_store %arg9[%c0_30, %c0_31], %63 {strides = array<i32>} : memref<8x8xf32, #tpu.memory_space<vmem>>, vector<8x8xf32>,
      %c3_i32 = arith.constant 3 : i32
      %c0_32 = arith.constant 0 : index
      %c0_33 = arith.constant 0 : index
      %65 = vector.load %arg9[%c0_32, %c0_33] : memref<8x8xf32, #tpu.memory_space<vmem>>, vector<8x8xf32>
      %66 = arith.index_cast %c3_i32 : i32 to index
      %c0_34 = arith.constant 0 : index
      %c0_35 = arith.constant 0 : index
      %67 = vector.load %arg2[%66, %c0_34, %c0_35] : memref<4x8x8xf32, #tpu.memory_space<vmem>>, vector<1x8x8xf32>
      %68 = vector.shape_cast %67 : vector<1x8x8xf32> to vector<8x8xf32>
      %cst_36 = arith.constant dense<0xFF800000> : vector<8xf32>
      %69 = vector.multi_reduction <maximumf>, %65, %cst_36 [1] : vector<8x8xf32> to vector<8xf32>
      %70 = vector.shape_cast %69 : vector<8xf32> to vector<8x1xf32>
      %71 = vector.broadcast %70 : vector<8x1xf32> to vector<8x8xf32>
      %72 = arith.subf %65, %71 : vector<8x8xf32>
      %73 = math.exp %72 : vector<8x8xf32>
      %cst_37 = arith.constant dense<0.000000e+00> : vector<8x8xf32>
      %74 = tpu.matmul %73, %1, %cst_37 {dimension_numbers = #tpu.dot_dimension_numbers<[1], [0], [0], [1], [0, 0, 1, 1], [], []>} : vector<8x8xf32>, vector<8x8xf32>, vector<8x8xf32> -> vector<8x8xf32>
      %75 = vector.broadcast %70 : vector<8x1xf32> to vector<8x8xf32>
      %76 = vector.broadcast %2 : vector<1x8xf32> to vector<8x8xf32>
      %77 = arith.addf %75, %76 : vector<8x8xf32>
      %78 = math.log %74 : vector<8x8xf32>
      %79 = arith.addf %77, %78 : vector<8x8xf32>
      %80 = arith.addf %79, %68 : vector<8x8xf32>
      %81 = arith.addi %0, %c3_i32 : i32
      %82 = vector.broadcast %81 : i32 to vector<8x1xi32>
      %83 = arith.cmpi slt, %82, %3 : vector<8x1xi32>
      %84 = vector.shape_cast %83 : vector<8x1xi1> to vector<8x1xi1>
      %85 = vector.broadcast %84 : vector<8x1xi1> to vector<8x8xi1>
      %86 = arith.select %85, %80, %65 : vector<8x8xi1>, vector<8x8xf32>
      %c0_38 = arith.constant 0 : index
      %c0_39 = arith.constant 0 : index
      %87 = vector.load %arg9[%c0_38, %c0_39] : memref<8x8xf32, #tpu.memory_space<vmem>>, vector<8x8xf32>
      tpu.vector_store %arg9[%c0_38, %c0_39], %86 {strides = array<i32>} : memref<8x8xf32, #tpu.memory_space<vmem>>, vector<8x8xf32>,
      %c3_i32_40 = arith.constant 3 : i32
    } else {
    }
    %c0_i32_6 = arith.constant 0 : i32
    %7 = arith.cmpi ne, %arg1, %c0_i32_6 : i32
    %8 = arith.extui %7 : i1 to i32
    %c0_i32_7 = arith.constant 0 : i32
    %9 = arith.cmpi ne, %8, %c0_i32_7 : i32
    scf.if %9 {
      %c0_i32_9 = arith.constant 0 : i32
      %c0_10 = arith.constant 0 : index
      %c0_11 = arith.constant 0 : index
      %13 = vector.load %arg9[%c0_10, %c0_11] : memref<8x8xf32, #tpu.memory_space<vmem>>, vector<8x8xf32>
      %14 = arith.index_cast %c0_i32_9 : i32 to index
      %c0_12 = arith.constant 0 : index
      %c0_13 = arith.constant 0 : index
      %15 = vector.load %arg2[%14, %c0_12, %c0_13] : memref<4x8x8xf32, #tpu.memory_space<vmem>>, vector<1x8x8xf32>
      %16 = vector.shape_cast %15 : vector<1x8x8xf32> to vector<8x8xf32>
      %cst = arith.constant dense<0xFF800000> : vector<8xf32>
      %17 = vector.multi_reduction <maximumf>, %13, %cst [1] : vector<8x8xf32> to vector<8xf32>
      %18 = vector.shape_cast %17 : vector<8xf32> to vector<8x1xf32>
      %19 = vector.broadcast %18 : vector<8x1xf32> to vector<8x8xf32>
      %20 = arith.subf %13, %19 : vector<8x8xf32>
      %21 = math.exp %20 : vector<8x8xf32>
      %cst_14 = arith.constant dense<0.000000e+00> : vector<8x8xf32>
      %22 = tpu.matmul %21, %1, %cst_14 {dimension_numbers = #tpu.dot_dimension_numbers<[1], [0], [0], [1], [0, 0, 1, 1], [], []>} : vector<8x8xf32>, vector<8x8xf32>, vector<8x8xf32> -> vector<8x8xf32>
      %23 = vector.broadcast %18 : vector<8x1xf32> to vector<8x8xf32>
      %24 = vector.broadcast %2 : vector<1x8xf32> to vector<8x8xf32>
      %25 = arith.addf %23, %24 : vector<8x8xf32>
      %26 = math.log %22 : vector<8x8xf32>
      %27 = arith.addf %25, %26 : vector<8x8xf32>
      %28 = arith.addf %27, %16 : vector<8x8xf32>
      %29 = arith.addi %0, %c0_i32_9 : i32
      %30 = vector.broadcast %29 : i32 to vector<8x1xi32>
      %31 = arith.cmpi slt, %30, %3 : vector<8x1xi32>
      %32 = vector.shape_cast %31 : vector<8x1xi1> to vector<8x1xi1>
      %33 = vector.broadcast %32 : vector<8x1xi1> to vector<8x8xi1>
      %34 = arith.select %33, %28, %13 : vector<8x8xi1>, vector<8x8xf32>
      %c0_15 = arith.constant 0 : index
      %c0_16 = arith.constant 0 : index
      %35 = vector.load %arg9[%c0_15, %c0_16] : memref<8x8xf32, #tpu.memory_space<vmem>>, vector<8x8xf32>
      tpu.vector_store %arg9[%c0_15, %c0_16], %34 {strides = array<i32>} : memref<8x8xf32, #tpu.memory_space<vmem>>, vector<8x8xf32>,
      %c1_i32_17 = arith.constant 1 : i32
      %c0_18 = arith.constant 0 : index
      %c0_19 = arith.constant 0 : index
      %36 = vector.load %arg9[%c0_18, %c0_19] : memref<8x8xf32, #tpu.memory_space<vmem>>, vector<8x8xf32>
      %37 = arith.index_cast %c1_i32_17 : i32 to index
      %c0_20 = arith.constant 0 : index
      %c0_21 = arith.constant 0 : index
      %38 = vector.load %arg2[%37, %c0_20, %c0_21] : memref<4x8x8xf32, #tpu.memory_space<vmem>>, vector<1x8x8xf32>
      %39 = vector.shape_cast %38 : vector<1x8x8xf32> to vector<8x8xf32>
      %cst_22 = arith.constant dense<0xFF800000> : vector<8xf32>
      %40 = vector.multi_reduction <maximumf>, %36, %cst_22 [1] : vector<8x8xf32> to vector<8xf32>
      %41 = vector.shape_cast %40 : vector<8xf32> to vector<8x1xf32>
      %42 = vector.broadcast %41 : vector<8x1xf32> to vector<8x8xf32>
      %43 = arith.subf %36, %42 : vector<8x8xf32>
      %44 = math.exp %43 : vector<8x8xf32>
      %cst_23 = arith.constant dense<0.000000e+00> : vector<8x8xf32>
      %45 = tpu.matmul %44, %1, %cst_23 {dimension_numbers = #tpu.dot_dimension_numbers<[1], [0], [0], [1], [0, 0, 1, 1], [], []>} : vector<8x8xf32>, vector<8x8xf32>, vector<8x8xf32> -> vector<8x8xf32>
      %46 = vector.broadcast %41 : vector<8x1xf32> to vector<8x8xf32>
      %47 = vector.broadcast %2 : vector<1x8xf32> to vector<8x8xf32>
      %48 = arith.addf %46, %47 : vector<8x8xf32>
      %49 = math.log %45 : vector<8x8xf32>
      %50 = arith.addf %48, %49 : vector<8x8xf32>
      %51 = arith.addf %50, %39 : vector<8x8xf32>
      %52 = arith.addi %0, %c1_i32_17 : i32
      %53 = vector.broadcast %52 : i32 to vector<8x1xi32>
      %54 = arith.cmpi slt, %53, %3 : vector<8x1xi32>
      %55 = vector.shape_cast %54 : vector<8x1xi1> to vector<8x1xi1>
      %56 = vector.broadcast %55 : vector<8x1xi1> to vector<8x8xi1>
      %57 = arith.select %56, %51, %36 : vector<8x8xi1>, vector<8x8xf32>
      %c0_24 = arith.constant 0 : index
      %c0_25 = arith.constant 0 : index
      %58 = vector.load %arg9[%c0_24, %c0_25] : memref<8x8xf32, #tpu.memory_space<vmem>>, vector<8x8xf32>
      tpu.vector_store %arg9[%c0_24, %c0_25], %57 {strides = array<i32>} : memref<8x8xf32, #tpu.memory_space<vmem>>, vector<8x8xf32>,
      %c2_i32 = arith.constant 2 : i32
      %c0_26 = arith.constant 0 : index
      %c0_27 = arith.constant 0 : index
      %59 = vector.load %arg9[%c0_26, %c0_27] : memref<8x8xf32, #tpu.memory_space<vmem>>, vector<8x8xf32>
      %60 = arith.index_cast %c2_i32 : i32 to index
      %c0_28 = arith.constant 0 : index
      %c0_29 = arith.constant 0 : index
      %61 = vector.load %arg2[%60, %c0_28, %c0_29] : memref<4x8x8xf32, #tpu.memory_space<vmem>>, vector<1x8x8xf32>
      %62 = vector.shape_cast %61 : vector<1x8x8xf32> to vector<8x8xf32>
      %cst_30 = arith.constant dense<0xFF800000> : vector<8xf32>
      %63 = vector.multi_reduction <maximumf>, %59, %cst_30 [1] : vector<8x8xf32> to vector<8xf32>
      %64 = vector.shape_cast %63 : vector<8xf32> to vector<8x1xf32>
      %65 = vector.broadcast %64 : vector<8x1xf32> to vector<8x8xf32>
      %66 = arith.subf %59, %65 : vector<8x8xf32>
      %67 = math.exp %66 : vector<8x8xf32>
      %cst_31 = arith.constant dense<0.000000e+00> : vector<8x8xf32>
      %68 = tpu.matmul %67, %1, %cst_31 {dimension_numbers = #tpu.dot_dimension_numbers<[1], [0], [0], [1], [0, 0, 1, 1], [], []>} : vector<8x8xf32>, vector<8x8xf32>, vector<8x8xf32> -> vector<8x8xf32>
      %69 = vector.broadcast %64 : vector<8x1xf32> to vector<8x8xf32>
      %70 = vector.broadcast %2 : vector<1x8xf32> to vector<8x8xf32>
      %71 = arith.addf %69, %70 : vector<8x8xf32>
      %72 = math.log %68 : vector<8x8xf32>
      %73 = arith.addf %71, %72 : vector<8x8xf32>
      %74 = arith.addf %73, %62 : vector<8x8xf32>
      %75 = arith.addi %0, %c2_i32 : i32
      %76 = vector.broadcast %75 : i32 to vector<8x1xi32>
      %77 = arith.cmpi slt, %76, %3 : vector<8x1xi32>
      %78 = vector.shape_cast %77 : vector<8x1xi1> to vector<8x1xi1>
      %79 = vector.broadcast %78 : vector<8x1xi1> to vector<8x8xi1>
      %80 = arith.select %79, %74, %59 : vector<8x8xi1>, vector<8x8xf32>
      %c0_32 = arith.constant 0 : index
      %c0_33 = arith.constant 0 : index
      %81 = vector.load %arg9[%c0_32, %c0_33] : memref<8x8xf32, #tpu.memory_space<vmem>>, vector<8x8xf32>
      tpu.vector_store %arg9[%c0_32, %c0_33], %80 {strides = array<i32>} : memref<8x8xf32, #tpu.memory_space<vmem>>, vector<8x8xf32>,
      %c3_i32 = arith.constant 3 : i32
      %c0_34 = arith.constant 0 : index
      %c0_35 = arith.constant 0 : index
      %82 = vector.load %arg9[%c0_34, %c0_35] : memref<8x8xf32, #tpu.memory_space<vmem>>, vector<8x8xf32>
      %83 = arith.index_cast %c3_i32 : i32 to index
      %c0_36 = arith.constant 0 : index
      %c0_37 = arith.constant 0 : index
      %84 = vector.load %arg2[%83, %c0_36, %c0_37] : memref<4x8x8xf32, #tpu.memory_space<vmem>>, vector<1x8x8xf32>
      %85 = vector.shape_cast %84 : vector<1x8x8xf32> to vector<8x8xf32>
      %cst_38 = arith.constant dense<0xFF800000> : vector<8xf32>
      %86 = vector.multi_reduction <maximumf>, %82, %cst_38 [1] : vector<8x8xf32> to vector<8xf32>
      %87 = vector.shape_cast %86 : vector<8xf32> to vector<8x1xf32>
      %88 = vector.broadcast %87 : vector<8x1xf32> to vector<8x8xf32>
      %89 = arith.subf %82, %88 : vector<8x8xf32>
      %90 = math.exp %89 : vector<8x8xf32>
      %cst_39 = arith.constant dense<0.000000e+00> : vector<8x8xf32>
      %91 = tpu.matmul %90, %1, %cst_39 {dimension_numbers = #tpu.dot_dimension_numbers<[1], [0], [0], [1], [0, 0, 1, 1], [], []>} : vector<8x8xf32>, vector<8x8xf32>, vector<8x8xf32> -> vector<8x8xf32>
      %92 = vector.broadcast %87 : vector<8x1xf32> to vector<8x8xf32>
      %93 = vector.broadcast %2 : vector<1x8xf32> to vector<8x8xf32>
      %94 = arith.addf %92, %93 : vector<8x8xf32>
      %95 = math.log %91 : vector<8x8xf32>
      %96 = arith.addf %94, %95 : vector<8x8xf32>
      %97 = arith.addf %96, %85 : vector<8x8xf32>
      %98 = arith.addi %0, %c3_i32 : i32
      %99 = vector.broadcast %98 : i32 to vector<8x1xi32>
      %100 = arith.cmpi slt, %99, %3 : vector<8x1xi32>
      %101 = vector.shape_cast %100 : vector<8x1xi1> to vector<8x1xi1>
      %102 = vector.broadcast %101 : vector<8x1xi1> to vector<8x8xi1>
      %103 = arith.select %102, %97, %82 : vector<8x8xi1>, vector<8x8xf32>
      %c0_40 = arith.constant 0 : index
      %c0_41 = arith.constant 0 : index
      %104 = vector.load %arg9[%c0_40, %c0_41] : memref<8x8xf32, #tpu.memory_space<vmem>>, vector<8x8xf32>
      tpu.vector_store %arg9[%c0_40, %c0_41], %103 {strides = array<i32>} : memref<8x8xf32, #tpu.memory_space<vmem>>, vector<8x8xf32>,
      %c4_i32_42 = arith.constant 4 : i32
    } else {
    }
    %c1_i32 = arith.constant 1 : i32
    %10 = arith.cmpi eq, %arg1, %c1_i32 : i32
    %11 = arith.extui %10 : i1 to i32
    %c0_i32_8 = arith.constant 0 : i32
    %12 = arith.cmpi ne, %11, %c0_i32_8 : i32
    scf.if %12 {
      %c0_9 = arith.constant 0 : index
      %c0_10 = arith.constant 0 : index
      %13 = vector.load %arg9[%c0_9, %c0_10] : memref<8x8xf32, #tpu.memory_space<vmem>>, vector<8x8xf32>
      %c0_11 = arith.constant 0 : index
      %c0_12 = arith.constant 0 : index
      %14 = vector.load %arg7[%c0_11, %c0_12] : memref<1x8xf32, #tpu.memory_space<vmem>>, vector<1x8xf32>
      %15 = vector.broadcast %14 : vector<1x8xf32> to vector<8x8xf32>
      %16 = arith.addf %13, %15 : vector<8x8xf32>
      %cst = arith.constant dense<0xFF800000> : vector<8xf32>
      %17 = vector.multi_reduction <maximumf>, %16, %cst [1] : vector<8x8xf32> to vector<8xf32>
      %18 = vector.shape_cast %17 : vector<8xf32> to vector<8x1xf32>
      %19 = vector.broadcast %18 : vector<8x1xf32> to vector<8x8xf32>
      %20 = arith.subf %16, %19 : vector<8x8xf32>
      %21 = math.exp %20 : vector<8x8xf32>
      %cst_13 = arith.constant dense<0.000000e+00> : vector<8xf32>
      %22 = vector.multi_reduction <add>, %21, %cst_13 [1] : vector<8x8xf32> to vector<8xf32>
      %23 = vector.shape_cast %22 : vector<8xf32> to vector<8x1xf32>
      %24 = math.log %23 : vector<8x1xf32>
      %25 = arith.addf %18, %24 : vector<8x1xf32>
      %c0_14 = arith.constant 0 : index
      %c0_15 = arith.constant 0 : index
      %26 = vector.load %arg8[%c0_14, %c0_15] : memref<8x1xf32, #tpu.memory_space<vmem>>, vector<8x1xf32>
      tpu.vector_store %arg8[%c0_14, %c0_15], %25 {strides = array<i32>} : memref<8x1xf32, #tpu.memory_space<vmem>>, vector<8x1xf32>,
    } else {
    }
    return
  }
  func.func @transform_0(%arg0: i32, %arg1: i32) -> (i32, i32, i32) {
    %c0_i32 = arith.constant 0 : i32
    %c0_i32_0 = arith.constant 0 : i32
    return %arg1, %arg0, %c0_i32 : i32, i32, i32
  }
  func.func @transform_1(%arg0: i32, %arg1: i32) -> (i32, i32) {
    %c0_i32 = arith.constant 0 : i32
    %c0_i32_0 = arith.constant 0 : i32
    return %arg0, %c0_i32 : i32, i32
  }
  func.func @transform_2(%arg0: i32, %arg1: i32) -> (i32, i32) {
    %c0_i32 = arith.constant 0 : i32
    %c0_i32_0 = arith.constant 0 : i32
    %c0_i32_1 = arith.constant 0 : i32
    return %c0_i32, %c0_i32_0 : i32, i32
  }
  func.func @transform_3(%arg0: i32, %arg1: i32) -> (i32, i32) {
    %c0_i32 = arith.constant 0 : i32
    %c0_i32_0 = arith.constant 0 : i32
    %c0_i32_1 = arith.constant 0 : i32
    return %c0_i32, %c0_i32_0 : i32, i32
  }
  func.func @transform_4(%arg0: i32, %arg1: i32) -> (i32, i32) {
    %c0_i32 = arith.constant 0 : i32
    %c0_i32_0 = arith.constant 0 : i32
    %c0_i32_1 = arith.constant 0 : i32
    return %c0_i32, %c0_i32_0 : i32, i32
  }
  func.func @transform_5(%arg0: i32, %arg1: i32) -> (i32, i32) {
    %c0_i32 = arith.constant 0 : i32
    %c0_i32_0 = arith.constant 0 : i32
    %c0_i32_1 = arith.constant 0 : i32
    return %c0_i32, %c0_i32_0 : i32, i32
  }
  func.func @transform_6(%arg0: i32, %arg1: i32) -> (i32, i32) {
    %c0_i32 = arith.constant 0 : i32
    %c0_i32_0 = arith.constant 0 : i32
    return %arg0, %c0_i32 : i32, i32
  }
}

</mosaic_0001>

<llo_original>
// kernel: sequence_criteria_crf.1
$region0: #{sequence_criteria_crf.1}
  #allocation0 [shape = 'u32[]', space=smem, size = 0x4, offset = 0x4, fixed_abs, tag = 'smem constant byte address 0x4 - core index']
  #allocation1 [shape = 'u32[144,128]{1,0:T(1,128)}', space=vmem, size = 0x12000, scoped, tag = 'internal scratch']
  #allocation2 [shape = 'f32[8,8]{1,0:T(8,128)}', space=vmem, size = 0x1000, scoped, tag = 'scratch operand']
  %s0 = inlined_call_operand.vmem [shape: f32[8,8,8], index: 0, kind: input, shape index: {}]
  %s1 = inlined_call_operand.vmem [shape: s32[8,1], index: 1, kind: input, shape index: {}]
  %s2 = inlined_call_operand.vmem [shape: f32[8,8], index: 2, kind: input, shape index: {}]
  %s3 = inlined_call_operand.vmem [shape: f32[1,8], index: 3, kind: input, shape index: {}]
  %s4 = inlined_call_operand.vmem [shape: f32[1,8], index: 4, kind: input, shape index: {}]
  %s5 = inlined_call_operand.vmem [shape: f32[1,8], index: 5, kind: input, shape index: {}]
  %s6 = inlined_call_operand.vmem [shape: f32[8,1], index: 6, kind: output, shape index: {}]
  %s7 = sld [smem:[#allocation0]]
  $region69: #{sequence_criteria_crf.1} parent=0
    _
  %s9 = ssub.s32 1, %s7
  %s10 = scalar_select 0, %s9, %s7
  loop: start=0, step=1, limit=4
  $region2: #{sequence_criteria_crf.1} parent=0 // loop_pre_header
    _
  $region3: #{sequence_criteria_crf.1} parent=0 // loop_header
    %s12 = sphi 0, %s16
    %p13 = scmp.ge.s32.totalorder %s12, 4
    %s19 = sphi 0, %s31
    %s20 = sphi 0, %s27
    %s21 = sphi 0, %s19
    %s22 = sphi 0, %s20
    %s23 = sphi 0, %s21
    %s24 = sphi 0, %s22
    %s36 = sphi 0, %s38
    %s39 = sphi 0, %s36
    %s40 = sphi 0, %s39
    %s56 = sphi 0, %s40
    %s62 = sphi 0, %s64
    %s65 = sphi 0, %s62
    %s66 = sphi 0, %s65
    %s82 = sphi 0, %s66
    %s86 = sphi 0, %s86
    %s88 = sphi 0, %s86
    %s89 = sphi 0, %s88
    %s103 = sphi 0, %s89
    %s107 = sphi 0, %s107
    %s109 = sphi 0, %s107
    %s110 = sphi 0, %s109
    %s124 = sphi 0, %s110
    %s128 = sphi 0, %s128
    %s130 = sphi 0, %s128
    %s131 = sphi 0, %s130
    %s145 = sphi 0, %s131
    %s149 = sphi 0, %s149
    %s151 = sphi 0, %s149
    %s152 = sphi 0, %s151
    %s166 = sphi 0, %s152
    %s172 = sphi 0, %s174
    %s175 = sphi 0, %s172
    %s176 = sphi 0, %s175
    %s192 = sphi 0, %s176
  $region4: #{sequence_criteria_crf.1} parent=0 // loop_header_branch
    %15 = sbr.rel (%p13) target = $region8
  $region5: #{sequence_criteria_crf.1} parent=0 // loop_body
    %s17 = ssub.s32 %s12, 1
    %s18 = ssub.s32 %s12, 2
    %s25 = sadd.s32 1, %s20
    %p26 = scmp.ge.s32.totalorder %s25, 2
    %s27 = scalar_select %p26, 0, %s25
    %s28 = sadd.s32 1, %s19
    %s29 = scalar_select %p26, %s28, %s19
    %p30 = scmp.ge.s32.totalorder %s29, 1
    %s31 = scalar_select %p30, 0, %s29
    %s32 = ssub.s32 %s20, %s27
    %s33 = ssub.s32 %s19, %s31
    %s34 = sor.u32 %s32, %s33
    %p35 = scmp.eq.s32.totalorder %s34, 0
    %s37 = sadd.s32 %s36, 1
    %s38 = scalar_select %p35, %s36, %s37
    %p41 = pneg %p35
    %p42 = scmp.eq.s32.totalorder %s12, 1
    %p43 = por %p41, %p42
    %p44 = scmp.ne.s32.totalorder %s36, %s39
    %p45 = scmp.eq.s32.totalorder %s12, 0
    %p46 = por %p44, %p45
    %p47 = scmp.ne.s32.totalorder %s36, %s39
    %p48 = scmp.eq.s32.totalorder %s17, 1
    %p49 = por %p47, %p48
    %p50 = scmp.ne.s32.totalorder %s39, %s40
    %p51 = scmp.eq.s32.totalorder %s17, 0
    %p52 = por %p50, %p51
    %p53 = scmp.ne.s32.totalorder %s39, %s40
    %p54 = scmp.eq.s32.totalorder %s18, 1
    %p55 = por %p53, %p54
    %p57 = scmp.ne.s32.totalorder %s40, %s56
    %p58 = scmp.eq.s32.totalorder %s18, 0
    %p59 = por %p57, %p58
    %s60 = ssub.s32 %s19, %s31
    %p61 = scmp.eq.s32.totalorder %s60, 0
    %s63 = sadd.s32 %s62, 1
    %s64 = scalar_select %p61, %s62, %s63
    %p67 = pneg %p61
    %p68 = scmp.eq.s32.totalorder %s12, 1
    %p69 = por %p67, %p68
    %p70 = scmp.ne.s32.totalorder %s62, %s65
    %p71 = scmp.eq.s32.totalorder %s12, 0
    %p72 = por %p70, %p71
    %p73 = scmp.ne.s32.totalorder %s62, %s65
    %p74 = scmp.eq.s32.totalorder %s17, 1
    %p75 = por %p73, %p74
    %p76 = scmp.ne.s32.totalorder %s65, %s66
    %p77 = scmp.eq.s32.totalorder %s17, 0
    %p78 = por %p76, %p77
    %p79 = scmp.ne.s32.totalorder %s65, %s66
    %p80 = scmp.eq.s32.totalorder %s18, 1
    %p81 = por %p79, %p80
    %p83 = scmp.ne.s32.totalorder %s66, %s82
    %p84 = scmp.eq.s32.totalorder %s18, 0
    %p85 = por %p83, %p84
    %s87 = sadd.s32 %s86, 1
    %p90 = scmp.eq.s32.totalorder %s12, 1
    %p91 = scmp.ne.s32.totalorder %s86, %s88
    %p92 = scmp.eq.s32.totalorder %s12, 0
    %p93 = por %p91, %p92
    %p94 = scmp.ne.s32.totalorder %s86, %s88
    %p95 = scmp.eq.s32.totalorder %s17, 1
    %p96 = por %p94, %p95
    %p97 = scmp.ne.s32.totalorder %s88, %s89
    %p98 = scmp.eq.s32.totalorder %s17, 0
    %p99 = por %p97, %p98
    %p100 = scmp.ne.s32.totalorder %s88, %s89
    %p101 = scmp.eq.s32.totalorder %s18, 1
    %p102 = por %p100, %p101
    %p104 = scmp.ne.s32.totalorder %s89, %s103
    %p105 = scmp.eq.s32.totalorder %s18, 0
    %p106 = por %p104, %p105
    %s108 = sadd.s32 %s107, 1
    %p111 = scmp.eq.s32.totalorder %s12, 1
    %p112 = scmp.ne.s32.totalorder %s107, %s109
    %p113 = scmp.eq.s32.totalorder %s12, 0
    %p114 = por %p112, %p113
    %p115 = scmp.ne.s32.totalorder %s107, %s109
    %p116 = scmp.eq.s32.totalorder %s17, 1
    %p117 = por %p115, %p116
    %p118 = scmp.ne.s32.totalorder %s109, %s110
    %p119 = scmp.eq.s32.totalorder %s17, 0
    %p120 = por %p118, %p119
    %p121 = scmp.ne.s32.totalorder %s109, %s110
    %p122 = scmp.eq.s32.totalorder %s18, 1
    %p123 = por %p121, %p122
    %p125 = scmp.ne.s32.totalorder %s110, %s124
    %p126 = scmp.eq.s32.totalorder %s18, 0
    %p127 = por %p125, %p126
    %s129 = sadd.s32 %s128, 1
    %p132 = scmp.eq.s32.totalorder %s12, 1
    %p133 = scmp.ne.s32.totalorder %s128, %s130
    %p134 = scmp.eq.s32.totalorder %s12, 0
    %p135 = por %p133, %p134
    %p136 = scmp.ne.s32.totalorder %s128, %s130
    %p137 = scmp.eq.s32.totalorder %s17, 1
    %p138 = por %p136, %p137
    %p139 = scmp.ne.s32.totalorder %s130, %s131
    %p140 = scmp.eq.s32.totalorder %s17, 0
    %p141 = por %p139, %p140
    %p142 = scmp.ne.s32.totalorder %s130, %s131
    %p143 = scmp.eq.s32.totalorder %s18, 1
    %p144 = por %p142, %p143
    %p146 = scmp.ne.s32.totalorder %s131, %s145
    %p147 = scmp.eq.s32.totalorder %s18, 0
    %p148 = por %p146, %p147
    %s150 = sadd.s32 %s149, 1
    %p153 = scmp.eq.s32.totalorder %s12, 1
    %p154 = scmp.ne.s32.totalorder %s149, %s151
    %p155 = scmp.eq.s32.totalorder %s12, 0
    %p156 = por %p154, %p155
    %p157 = scmp.ne.s32.totalorder %s149, %s151
    %p158 = scmp.eq.s32.totalorder %s17, 1
    %p159 = por %p157, %p158
    %p160 = scmp.ne.s32.totalorder %s151, %s152
    %p161 = scmp.eq.s32.totalorder %s17, 0
    %p162 = por %p160, %p161
    %p163 = scmp.ne.s32.totalorder %s151, %s152
    %p164 = scmp.eq.s32.totalorder %s18, 1
    %p165 = por %p163, %p164
    %p167 = scmp.ne.s32.totalorder %s152, %s166
    %p168 = scmp.eq.s32.totalorder %s18, 0
    %p169 = por %p167, %p168
    %s170 = ssub.s32 %s19, %s31
    %p171 = scmp.eq.s32.totalorder %s170, 0
    %s173 = sadd.s32 %s172, 1
    %s174 = scalar_select %p171, %s172, %s173
    %p177 = pneg %p171
    %p178 = scmp.eq.s32.totalorder %s12, 1
    %p179 = por %p177, %p178
    %p180 = scmp.ne.s32.totalorder %s172, %s175
    %p181 = scmp.eq.s32.totalorder %s12, 0
    %p182 = por %p180, %p181
    %p183 = scmp.ne.s32.totalorder %s172, %s175
    %p184 = scmp.eq.s32.totalorder %s17, 1
    %p185 = por %p183, %p184
    %p186 = scmp.ne.s32.totalorder %s175, %s176
    %p187 = scmp.eq.s32.totalorder %s17, 0
    %p188 = por %p186, %p187
    %p189 = scmp.ne.s32.totalorder %s175, %s176
    %p190 = scmp.eq.s32.totalorder %s18, 1
    %p191 = por %p189, %p190
    %p193 = scmp.ne.s32.totalorder %s176, %s192
    %p194 = scmp.eq.s32.totalorder %s18, 0
    %p195 = por %p193, %p194
    %p196 = scmp.le.s32.totalorder 1, %s12
    %p197 = scmp.lt.s32.totalorder %s12, 3
    %p198 = pnand %p196, %p197
    %p199 = pneg %p198
    // Predicated region
    $region9: #{sequence_criteria_crf.1} parent=5 // pred_check
      _
    $region10: #{sequence_criteria_crf.1} parent=5 // pred_check_branch
      %201 = sbr.rel (%p198) target = $region12
    $region11: #{sequence_criteria_crf.1} parent=5 // pred_region
      %s202 = ssub.s32 %s12, 1
      // Predicated region
      $region13: #{sequence_criteria_crf.1} parent=11 // pred_check
        %p203 = pneg %p78
      $region14: #{sequence_criteria_crf.1} parent=11 // pred_check_branch
        %205 = sbr.rel (%p203) target = $region16
      $region15: #{sequence_criteria_crf.1} parent=11 // pred_region
        %p206 = scmp.lt.s32.totalorder %s21, 0
        %s207 = scalar_select %p206, %s21, 0
        %s208 = smul.addr %s207, 8
        %s209 = scalar_lea.vmem %s1, %s208
      $region16: #{sequence_criteria_crf.1} parent=11 // pred_fallthru
        _
      // Predicated region
      $region17: #{sequence_criteria_crf.1} parent=11 // pred_check
        %p210 = pneg %p99
      $region18: #{sequence_criteria_crf.1} parent=11 // pred_check_branch
        %212 = sbr.rel (%p210) target = $region20
      $region19: #{sequence_criteria_crf.1} parent=11 // pred_region
        _
      $region20: #{sequence_criteria_crf.1} parent=11 // pred_fallthru
        _
      // Predicated region
      $region21: #{sequence_criteria_crf.1} parent=11 // pred_check
        %p213 = pneg %p120
      $region22: #{sequence_criteria_crf.1} parent=11 // pred_check_branch
        %215 = sbr.rel (%p213) target = $region24
      $region23: #{sequence_criteria_crf.1} parent=11 // pred_region
        _
      $region24: #{sequence_criteria_crf.1} parent=11 // pred_fallthru
        _
      // Predicated region
      $region25: #{sequence_criteria_crf.1} parent=11 // pred_check
        %p216 = pneg %p141
      $region26: #{sequence_criteria_crf.1} parent=11 // pred_check_branch
        %218 = sbr.rel (%p216) target = $region28
      $region27: #{sequence_criteria_crf.1} parent=11 // pred_region
        _
      $region28: #{sequence_criteria_crf.1} parent=11 // pred_fallthru
        _
      // Predicated region
      $region29: #{sequence_criteria_crf.1} parent=11 // pred_check
        %p219 = pneg %p162
      $region30: #{sequence_criteria_crf.1} parent=11 // pred_check_branch
        %221 = sbr.rel (%p219) target = $region32
      $region31: #{sequence_criteria_crf.1} parent=11 // pred_region
        _
      $region32: #{sequence_criteria_crf.1} parent=11 // pred_fallthru
        _
    $region12: #{sequence_criteria_crf.1} parent=5 // pred_fallthru
      _
    %p222 = scmp.lt.s32.totalorder %s12, 2
    // Predicated region
    $region33: #{sequence_criteria_crf.1} parent=5 // pred_check
      %p223 = pneg %p222
    $region34: #{sequence_criteria_crf.1} parent=5 // pred_check_branch
      %225 = sbr.rel (%p223) target = $region36
    $region35: #{sequence_criteria_crf.1} parent=5 // pred_region
      // Predicated region
      $region37: #{sequence_criteria_crf.1} parent=35 // pred_check
        %p226 = pneg %p46
      $region38: #{sequence_criteria_crf.1} parent=35 // pred_check_branch
        %228 = sbr.rel (%p226) target = $region40
      $region39: #{sequence_criteria_crf.1} parent=35 // pred_region
        %s229 = smul.u32 4, %s20
        %p230 = scmp.lt.s32.totalorder %s229, 7
        %s231 = scalar_select %p230, %s229, 7
        %p232 = scmp.lt.s32.totalorder %s19, 0
        %s233 = scalar_select %p232, %s19, 0
        %s234 = sadd.s32 %s233, %s231
        %s235 = smul.addr %s234, 8
        %s236 = scalar_lea.vmem %s0, %s235
        %s237 = smul.u32 4, %s20
      $region40: #{sequence_criteria_crf.1} parent=35 // pred_fallthru
        _
    $region36: #{sequence_criteria_crf.1} parent=5 // pred_fallthru
      _
    %p238 = scmp.le.s32.totalorder 1, %s12
    %p239 = scmp.lt.s32.totalorder %s12, 3
    %p240 = pnand %p238, %p239
    %p241 = pneg %p240
    // Predicated region
    $region41: #{sequence_criteria_crf.1} parent=5 // pred_check
      _
    $region42: #{sequence_criteria_crf.1} parent=5 // pred_check_branch
      %243 = sbr.rel (%p240) target = $region44
    $region43: #{sequence_criteria_crf.1} parent=5 // pred_region
      %s244 = ssub.s32 %s12, 1
      %s245 = smul.u32 4, %s22
      %p246 = scmp.lt.s32.totalorder %s245, 7
      %s247 = scalar_select %p246, %s245, 7
      %p248 = scmp.lt.s32.totalorder %s21, 0
      %s249 = scalar_select %p248, %s21, 0
      %s250 = sadd.s32 %s249, %s247
      %s251 = smul.addr %s250, 8
      %s252 = scalar_lea.vmem %s0, %s251
      %p253 = pneg %p52
      %p254 = pneg %p49
      %p255 = scmp.lt.s32.totalorder %s21, 0
      %s256 = scalar_select %p255, %s21, 0
      %s257 = smul.addr %s256, 8
      %s258 = scalar_lea.vmem %s1, %s257
      %p259 = pneg %p78
      %p260 = pneg %p75
      %p261 = pneg %p99
      %p262 = pneg %p96
      %p263 = pneg %p120
      %p264 = pneg %p117
      %p265 = pneg %p141
      %p266 = pneg %p138
      %p267 = pneg %p162
      %p268 = pneg %p159
      %p269 = pneg %p188
      %p270 = pneg %p185
      %p271 = scmp.lt.s32.totalorder %s21, 0
      %s272 = scalar_select %p271, %s21, 0
      %s273 = smul.addr %s272, 8
      %s274 = scalar_lea.vmem %s6, %s273
      %s275 = smul.u32 4, %s22
      %p276 = scmp.lt.s32.totalorder %s275, 7
      %s277 = scalar_select %p276, %s275, 7
      %p278 = scmp.lt.s32.totalorder %s21, 0
      %s279 = scalar_select %p278, %s21, 0
      %s280 = sadd.s32 %s279, %s277
      %s281 = smul.addr %s280, 8
      %s282 = scalar_lea.vmem %s0, %s281
      %s283 = smul.u32 4, %s22
      %p284 = scmp.lt.s32.totalorder %s21, 0
      %s285 = scalar_select %p284, %s21, 0
      %s286 = smul.addr %s285, 8
      %s287 = scalar_lea.vmem %s1, %s286
      %p288 = scmp.lt.s32.totalorder %s21, 0
      %s289 = scalar_select %p288, %s21, 0
      %s290 = smul.addr %s289, 8
      %s291 = scalar_lea.vmem %s6, %s290
      %s292 = smul.u32 %s22, 4
      %v293 = vld [vmem:[%s2] sm:$0xff]
      %v294 = vld [vmem:[%s3] sm:$0x1]
      %v295 = vld [vmem:[%s287] sm:$0xff]
      %p296 = scmp.eq.s32.totalorder %s22, 0
      // Predicated region
      $region45: #{sequence_criteria_crf.1} parent=43 // pred_check
        %p297 = pneg %p296
      $region46: #{sequence_criteria_crf.1} parent=43 // pred_check_branch
        %299 = sbr.rel (%p297) target = $region48
      $region47: #{sequence_criteria_crf.1} parent=43 // pred_region
        %v300 = vld [vmem:[%s282] sm:$0xff]
        %v301 = vld [vmem:[%s4] sm:$0x1]
        %v303 = vlaneseq
        %v304 = vshrl.u32 %v303, 7
        %v305 = vsub.s32 0, %v304
        %v306 = vrot.slane %v301, %v305
        %v308 = vadd.f32 %v300, %v306
        %vm309 = vcmask 64512
        %310 = vst.msk [vmem:[#allocation2] sm:$0xff] %vm309, %v308
        %v311 = vld [vmem:[#allocation2] sm:$0xff]
        %s312 = scalar_lea.vmem %s282, 8
        %v313 = vld [vmem:[%s312] sm:$0xff]
        %v314 = vsel %vm309, %v311, -inf
        %315 = vmax.xlane.f32.xlu0 %v314
        %v316 = vpop.xlane.xlu0 %315
        %v317 = vsub.f32 %v311, %v316
        %v318 = vmul.f32 %v317, 1.442695
        %v319 = vpow.pop %v318
        %v321 = vsel %vm309, %v319, 0
        %323 = vmatprep.subr.mxu0 0.0
        %324 = vmatpush1.msra.mxu0 0.0
        %325 = vmatprep.subr.mxu0 0.0
        %326 = vmatpush1.msra.mxu0 0.0
        %327 = vmatprep.subr.mxu0 0.0
        %328 = vmatpush1.msra.mxu0 0.0
        %329 = vmatprep.subr.mxu0 0.0
        %330 = vmatpush1.msra.mxu0 0.0
        %331 = vmatprep.subr.mxu0 0.0
        %332 = vmatpush1.msra.mxu0 0.0
        %333 = vmatprep.subr.mxu0 0.0
        %334 = vmatpush1.msra.mxu0 0.0
        %335 = vmatprep.subr.mxu0 0.0
        %336 = vmatpush1.msra.mxu0 0.0
        %337 = vmatprep.subr.mxu0 0.0
        %338 = vmatpush1.msra.mxu0 0.0
        %339 = vmatprep.subr.mxu0 0.0
        %340 = vmatpush1.msra.mxu0 0.0
        %341 = vmatprep.subr.mxu0 0.0
        %342 = vmatpush1.msra.mxu0 0.0
        %343 = vmatprep.subr.mxu0 0.0
        %344 = vmatpush1.msra.mxu0 0.0
        %345 = vmatprep.subr.mxu0 0.0
        %346 = vmatpush1.msra.mxu0 0.0
        %347 = vmatprep.subr.mxu0 0.0
        %348 = vmatpush1.msra.mxu0 0.0
        %349 = vmatprep.subr.mxu0 0.0
        %350 = vmatpush1.msra.mxu0 0.0
        %351 = vmatprep.subr.mxu0 0.0
        %352 = vmatpush1.msra.mxu0 0.0
        %353 = vmatprep.subr.mxu0 0.0
        %354 = vmatpush1.msra.mxu0 %v293
        %355 = vmatprep.subr.mxu0 0.0
        %356 = vmatpush2.msra.mxu0 0.0
        %357 = vmatprep.subr.mxu0 0.0
        %358 = vmatpush2.msra.mxu0 0.0
        %359 = vmatprep.subr.mxu0 0.0
        %360 = vmatpush2.msra.mxu0 0.0
        %361 = vmatprep.subr.mxu0 0.0
        %362 = vmatpush2.msra.mxu0 0.0
        %363 = vmatprep.subr.mxu0 0.0
        %364 = vmatpush2.msra.mxu0 0.0
        %365 = vmatprep.subr.mxu0 0.0
        %366 = vmatpush2.msra.mxu0 0.0
        %367 = vmatprep.subr.mxu0 0.0
        %368 = vmatpush2.msra.mxu0 0.0
        %369 = vmatprep.subr.mxu0 0.0
        %370 = vmatpush2.msra.mxu0 0.0
        %371 = vmatprep.subr.mxu0 0.0
        %372 = vmatpush2.msra.mxu0 0.0
        %373 = vmatprep.subr.mxu0 0.0
        %374 = vmatpush2.msra.mxu0 0.0
        %375 = vmatprep.subr.mxu0 0.0
        %376 = vmatpush2.msra.mxu0 0.0
        %377 = vmatprep.subr.mxu0 0.0
        %378 = vmatpush2.msra.mxu0 0.0
        %379 = vmatprep.subr.mxu0 0.0
        %380 = vmatpush2.msra.mxu0 0.0
        %381 = vmatprep.subr.mxu0 0.0
        %382 = vmatpush2.msra.mxu0 0.0
        %383 = vmatprep.subr.mxu0 0.0
        %384 = vmatpush2.msra.mxu0 0.0
        %385 = vmatprep.subr.mxu0 0.0
        %386 = vmatpush2.msra.mxu0 0.0
        %387 = vmatprep.mubr.f32.mxu0 0.0
        %388 = vmatmul.mubr.f32.gmra.mxu0 %v321
        %v389 = vpop.f32.mrf.mxu0
        %v390 = vadd.f32 0.0, %v389
        %v391 = vpop.f32.mrf.mxu0
        %392 = vdwg.mxu0
        %v394 = vlaneseq
        %v395 = vshrl.u32 %v394, 7
        %v396 = vsub.s32 0, %v395
        %v397 = vrot.slane %v294, %v396
        %v399 = vadd.f32 %v316, %v397
        %v400 = vlog2.pop %v390
        %v401 = vmul.f32 %v400, 0.6931472
        %v402 = vadd.f32 %v399, %v401
        %v403 = vadd.f32 %v402, %v313
        %s404 = sadd.s32 %s292, 1
        %v405 = vstv %s404
        %vm406 = vcmp.lt.s32.totalorder %v405, %v295
        %v407 = vsel %vm406, 1, 0
        %408 = vset.pattern.permute.xlu0 0
        %409 = vperm.xlu0 %408, %v407
        %v410 = vpop.permute.xlu0 %409
        %vm411 = vcmp.eq.s32.totalorder %v410, 1
        %v412 = vsel %vm411, %v403, %v311
        %413 = vst.msk [vmem:[#allocation2] sm:$0xff] %vm309, %v412
        %v414 = vld [vmem:[#allocation2] sm:$0xff]
        %s415 = scalar_lea.vmem %s282, 16
        %v416 = vld [vmem:[%s415] sm:$0xff]
        %v417 = vsel %vm309, %v414, -inf
        %418 = vmax.xlane.f32.xlu0 %v417
        %v419 = vpop.xlane.xlu0 %418
        %v420 = vsub.f32 %v414, %v419
        %v421 = vmul.f32 %v420, 1.442695
        %v422 = vpow.pop %v421
        %v424 = vsel %vm309, %v422, 0
        %426 = vmatprep.subr.mxu0 0.0
        %427 = vmatpush1.msra.mxu0 0.0
        %428 = vmatprep.subr.mxu0 0.0
        %429 = vmatpush1.msra.mxu0 0.0
        %430 = vmatprep.subr.mxu0 0.0
        %431 = vmatpush1.msra.mxu0 0.0
        %432 = vmatprep.subr.mxu0 0.0
        %433 = vmatpush1.msra.mxu0 0.0
        %434 = vmatprep.subr.mxu0 0.0
        %435 = vmatpush1.msra.mxu0 0.0
        %436 = vmatprep.subr.mxu0 0.0
        %437 = vmatpush1.msra.mxu0 0.0
        %438 = vmatprep.subr.mxu0 0.0
        %439 = vmatpush1.msra.mxu0 0.0
        %440 = vmatprep.subr.mxu0 0.0
        %441 = vmatpush1.msra.mxu0 0.0
        %442 = vmatprep.subr.mxu0 0.0
        %443 = vmatpush1.msra.mxu0 0.0
        %444 = vmatprep.subr.mxu0 0.0
        %445 = vmatpush1.msra.mxu0 0.0
        %446 = vmatprep.subr.mxu0 0.0
        %447 = vmatpush1.msra.mxu0 0.0
        %448 = vmatprep.subr.mxu0 0.0
        %449 = vmatpush1.msra.mxu0 0.0
        %450 = vmatprep.subr.mxu0 0.0
        %451 = vmatpush1.msra.mxu0 0.0
        %452 = vmatprep.subr.mxu0 0.0
        %453 = vmatpush1.msra.mxu0 0.0
        %454 = vmatprep.subr.mxu0 0.0
        %455 = vmatpush1.msra.mxu0 0.0
        %456 = vmatprep.subr.mxu0 0.0
        %457 = vmatpush1.msra.mxu0 %v293
        %458 = vmatprep.subr.mxu0 0.0
        %459 = vmatpush2.msra.mxu0 0.0
        %460 = vmatprep.subr.mxu0 0.0
        %461 = vmatpush2.msra.mxu0 0.0
        %462 = vmatprep.subr.mxu0 0.0
        %463 = vmatpush2.msra.mxu0 0.0
        %464 = vmatprep.subr.mxu0 0.0
        %465 = vmatpush2.msra.mxu0 0.0
        %466 = vmatprep.subr.mxu0 0.0
        %467 = vmatpush2.msra.mxu0 0.0
        %468 = vmatprep.subr.mxu0 0.0
        %469 = vmatpush2.msra.mxu0 0.0
        %470 = vmatprep.subr.mxu0 0.0
        %471 = vmatpush2.msra.mxu0 0.0
        %472 = vmatprep.subr.mxu0 0.0
        %473 = vmatpush2.msra.mxu0 0.0
        %474 = vmatprep.subr.mxu0 0.0
        %475 = vmatpush2.msra.mxu0 0.0
        %476 = vmatprep.subr.mxu0 0.0
        %477 = vmatpush2.msra.mxu0 0.0
        %478 = vmatprep.subr.mxu0 0.0
        %479 = vmatpush2.msra.mxu0 0.0
        %480 = vmatprep.subr.mxu0 0.0
        %481 = vmatpush2.msra.mxu0 0.0
        %482 = vmatprep.subr.mxu0 0.0
        %483 = vmatpush2.msra.mxu0 0.0
        %484 = vmatprep.subr.mxu0 0.0
        %485 = vmatpush2.msra.mxu0 0.0
        %486 = vmatprep.subr.mxu0 0.0
        %487 = vmatpush2.msra.mxu0 0.0
        %488 = vmatprep.subr.mxu0 0.0
        %489 = vmatpush2.msra.mxu0 0.0
        %490 = vmatprep.mubr.f32.mxu0 0.0
        %491 = vmatmul.mubr.f32.gmra.mxu0 %v424
        %v492 = vpop.f32.mrf.mxu0
        %v493 = vadd.f32 0.0, %v492
        %v494 = vpop.f32.mrf.mxu0
        %495 = vdwg.mxu0
        %v496 = vadd.f32 %v419, %v397
        %v497 = vlog2.pop %v493
        %v498 = vmul.f32 %v497, 0.6931472
        %v499 = vadd.f32 %v496, %v498
        %v500 = vadd.f32 %v499, %v416
        %s501 = sadd.s32 %s292, 2
        %v502 = vstv %s501
        %vm503 = vcmp.lt.s32.totalorder %v502, %v295
        %v504 = vsel %vm503, 1, 0
        %505 = vset.pattern.permute.xlu0 0
        %506 = vperm.xlu0 %505, %v504
        %v507 = vpop.permute.xlu0 %506
        %vm508 = vcmp.eq.s32.totalorder %v507, 1
        %v509 = vsel %vm508, %v500, %v414
        %510 = vst.msk [vmem:[#allocation2] sm:$0xff] %vm309, %v509
        %v511 = vld [vmem:[#allocation2] sm:$0xff]
        %s512 = scalar_lea.vmem %s282, 24
        %v513 = vld [vmem:[%s512] sm:$0xff]
        %v514 = vsel %vm309, %v511, -inf
        %515 = vmax.xlane.f32.xlu0 %v514
        %v516 = vpop.xlane.xlu0 %515
        %v517 = vsub.f32 %v511, %v516
        %v518 = vmul.f32 %v517, 1.442695
        %v519 = vpow.pop %v518
        %v521 = vsel %vm309, %v519, 0
        %523 = vmatprep.subr.mxu0 0.0
        %524 = vmatpush1.msra.mxu0 0.0
        %525 = vmatprep.subr.mxu0 0.0
        %526 = vmatpush1.msra.mxu0 0.0
        %527 = vmatprep.subr.mxu0 0.0
        %528 = vmatpush1.msra.mxu0 0.0
        %529 = vmatprep.subr.mxu0 0.0
        %530 = vmatpush1.msra.mxu0 0.0
        %531 = vmatprep.subr.mxu0 0.0
        %532 = vmatpush1.msra.mxu0 0.0
        %533 = vmatprep.subr.mxu0 0.0
        %534 = vmatpush1.msra.mxu0 0.0
        %535 = vmatprep.subr.mxu0 0.0
        %536 = vmatpush1.msra.mxu0 0.0
        %537 = vmatprep.subr.mxu0 0.0
        %538 = vmatpush1.msra.mxu0 0.0
        %539 = vmatprep.subr.mxu0 0.0
        %540 = vmatpush1.msra.mxu0 0.0
        %541 = vmatprep.subr.mxu0 0.0
        %542 = vmatpush1.msra.mxu0 0.0
        %543 = vmatprep.subr.mxu0 0.0
        %544 = vmatpush1.msra.mxu0 0.0
        %545 = vmatprep.subr.mxu0 0.0
        %546 = vmatpush1.msra.mxu0 0.0
        %547 = vmatprep.subr.mxu0 0.0
        %548 = vmatpush1.msra.mxu0 0.0
        %549 = vmatprep.subr.mxu0 0.0
        %550 = vmatpush1.msra.mxu0 0.0
        %551 = vmatprep.subr.mxu0 0.0
        %552 = vmatpush1.msra.mxu0 0.0
        %553 = vmatprep.subr.mxu0 0.0
        %554 = vmatpush1.msra.mxu0 %v293
        %555 = vmatprep.subr.mxu0 0.0
        %556 = vmatpush2.msra.mxu0 0.0
        %557 = vmatprep.subr.mxu0 0.0
        %558 = vmatpush2.msra.mxu0 0.0
        %559 = vmatprep.subr.mxu0 0.0
        %560 = vmatpush2.msra.mxu0 0.0
        %561 = vmatprep.subr.mxu0 0.0
        %562 = vmatpush2.msra.mxu0 0.0
        %563 = vmatprep.subr.mxu0 0.0
        %564 = vmatpush2.msra.mxu0 0.0
        %565 = vmatprep.subr.mxu0 0.0
        %566 = vmatpush2.msra.mxu0 0.0
        %567 = vmatprep.subr.mxu0 0.0
        %568 = vmatpush2.msra.mxu0 0.0
        %569 = vmatprep.subr.mxu0 0.0
        %570 = vmatpush2.msra.mxu0 0.0
        %571 = vmatprep.subr.mxu0 0.0
        %572 = vmatpush2.msra.mxu0 0.0
        %573 = vmatprep.subr.mxu0 0.0
        %574 = vmatpush2.msra.mxu0 0.0
        %575 = vmatprep.subr.mxu0 0.0
        %576 = vmatpush2.msra.mxu0 0.0
        %577 = vmatprep.subr.mxu0 0.0
        %578 = vmatpush2.msra.mxu0 0.0
        %579 = vmatprep.subr.mxu0 0.0
        %580 = vmatpush2.msra.mxu0 0.0
        %581 = vmatprep.subr.mxu0 0.0
        %582 = vmatpush2.msra.mxu0 0.0
        %583 = vmatprep.subr.mxu0 0.0
        %584 = vmatpush2.msra.mxu0 0.0
        %585 = vmatprep.subr.mxu0 0.0
        %586 = vmatpush2.msra.mxu0 0.0
        %587 = vmatprep.mubr.f32.mxu0 0.0
        %588 = vmatmul.mubr.f32.gmra.mxu0 %v521
        %v589 = vpop.f32.mrf.mxu0
        %v590 = vadd.f32 0.0, %v589
        %v591 = vpop.f32.mrf.mxu0
        %592 = vdwg.mxu0
        %v593 = vadd.f32 %v516, %v397
        %v594 = vlog2.pop %v590
        %v595 = vmul.f32 %v594, 0.6931472
        %v596 = vadd.f32 %v593, %v595
        %v597 = vadd.f32 %v596, %v513
        %s598 = sadd.s32 %s292, 3
        %v599 = vstv %s598
        %vm600 = vcmp.lt.s32.totalorder %v599, %v295
        %v601 = vsel %vm600, 1, 0
        %602 = vset.pattern.permute.xlu0 0
        %603 = vperm.xlu0 %602, %v601
        %v604 = vpop.permute.xlu0 %603
        %vm605 = vcmp.eq.s32.totalorder %v604, 1
        %v606 = vsel %vm605, %v597, %v511
        %607 = vst.msk [vmem:[#allocation2] sm:$0xff] %vm309, %v606
      $region48: #{sequence_criteria_crf.1} parent=43 // pred_fallthru
        _
      %p608 = scmp.ne.s32.totalorder %s22, 0
      // Predicated region
      $region49: #{sequence_criteria_crf.1} parent=43 // pred_check
        %p609 = pneg %p608
      $region50: #{sequence_criteria_crf.1} parent=43 // pred_check_branch
        %611 = sbr.rel (%p609) target = $region52
      $region51: #{sequence_criteria_crf.1} parent=43 // pred_region
        %v612 = vld [vmem:[#allocation2] sm:$0xff]
        %v613 = vld [vmem:[%s282] sm:$0xff]
        %vm614 = vcmask 64512
        %v615 = vsel %vm614, %v612, -inf
        %616 = vmax.xlane.f32.xlu0 %v615
        %v617 = vpop.xlane.xlu0 %616
        %v618 = vsub.f32 %v612, %v617
        %v619 = vmul.f32 %v618, 1.442695
        %v620 = vpow.pop %v619
        %v622 = vsel %vm614, %v620, 0
        %624 = vmatprep.subr.mxu0 0.0
        %625 = vmatpush1.msra.mxu0 0.0
        %626 = vmatprep.subr.mxu0 0.0
        %627 = vmatpush1.msra.mxu0 0.0
        %628 = vmatprep.subr.mxu0 0.0
        %629 = vmatpush1.msra.mxu0 0.0
        %630 = vmatprep.subr.mxu0 0.0
        %631 = vmatpush1.msra.mxu0 0.0
        %632 = vmatprep.subr.mxu0 0.0
        %633 = vmatpush1.msra.mxu0 0.0
        %634 = vmatprep.subr.mxu0 0.0
        %635 = vmatpush1.msra.mxu0 0.0
        %636 = vmatprep.subr.mxu0 0.0
        %637 = vmatpush1.msra.mxu0 0.0
        %638 = vmatprep.subr.mxu0 0.0
        %639 = vmatpush1.msra.mxu0 0.0
        %640 = vmatprep.subr.mxu0 0.0
        %641 = vmatpush1.msra.mxu0 0.0
        %642 = vmatprep.subr.mxu0 0.0
        %643 = vmatpush1.msra.mxu0 0.0
        %644 = vmatprep.subr.mxu0 0.0
        %645 = vmatpush1.msra.mxu0 0.0
        %646 = vmatprep.subr.mxu0 0.0
        %647 = vmatpush1.msra.mxu0 0.0
        %648 = vmatprep.subr.mxu0 0.0
        %649 = vmatpush1.msra.mxu0 0.0
        %650 = vmatprep.subr.mxu0 0.0
        %651 = vmatpush1.msra.mxu0 0.0
        %652 = vmatprep.subr.mxu0 0.0
        %653 = vmatpush1.msra.mxu0 0.0
        %654 = vmatprep.subr.mxu0 0.0
        %655 = vmatpush1.msra.mxu0 %v293
        %656 = vmatprep.subr.mxu0 0.0
        %657 = vmatpush2.msra.mxu0 0.0
        %658 = vmatprep.subr.mxu0 0.0
        %659 = vmatpush2.msra.mxu0 0.0
        %660 = vmatprep.subr.mxu0 0.0
        %661 = vmatpush2.msra.mxu0 0.0
        %662 = vmatprep.subr.mxu0 0.0
        %663 = vmatpush2.msra.mxu0 0.0
        %664 = vmatprep.subr.mxu0 0.0
        %665 = vmatpush2.msra.mxu0 0.0
        %666 = vmatprep.subr.mxu0 0.0
        %667 = vmatpush2.msra.mxu0 0.0
        %668 = vmatprep.subr.mxu0 0.0
        %669 = vmatpush2.msra.mxu0 0.0
        %670 = vmatprep.subr.mxu0 0.0
        %671 = vmatpush2.msra.mxu0 0.0
        %672 = vmatprep.subr.mxu0 0.0
        %673 = vmatpush2.msra.mxu0 0.0
        %674 = vmatprep.subr.mxu0 0.0
        %675 = vmatpush2.msra.mxu0 0.0
        %676 = vmatprep.subr.mxu0 0.0
        %677 = vmatpush2.msra.mxu0 0.0
        %678 = vmatprep.subr.mxu0 0.0
        %679 = vmatpush2.msra.mxu0 0.0
        %680 = vmatprep.subr.mxu0 0.0
        %681 = vmatpush2.msra.mxu0 0.0
        %682 = vmatprep.subr.mxu0 0.0
        %683 = vmatpush2.msra.mxu0 0.0
        %684 = vmatprep.subr.mxu0 0.0
        %685 = vmatpush2.msra.mxu0 0.0
        %686 = vmatprep.subr.mxu0 0.0
        %687 = vmatpush2.msra.mxu0 0.0
        %688 = vmatprep.mubr.f32.mxu0 0.0
        %689 = vmatmul.mubr.f32.gmra.mxu0 %v622
        %v690 = vpop.f32.mrf.mxu0
        %v691 = vadd.f32 0.0, %v690
        %v692 = vpop.f32.mrf.mxu0
        %693 = vdwg.mxu0
        %v695 = vlaneseq
        %v696 = vshrl.u32 %v695, 7
        %v697 = vsub.s32 0, %v696
        %v698 = vrot.slane %v294, %v697
        %v700 = vadd.f32 %v617, %v698
        %v701 = vlog2.pop %v691
        %v702 = vmul.f32 %v701, 0.6931472
        %v703 = vadd.f32 %v700, %v702
        %v704 = vadd.f32 %v703, %v613
        %v705 = vstv %s292
        %vm706 = vcmp.lt.s32.totalorder %v705, %v295
        %v707 = vsel %vm706, 1, 0
        %708 = vset.pattern.permute.xlu0 0
        %709 = vperm.xlu0 %708, %v707
        %v710 = vpop.permute.xlu0 %709
        %vm711 = vcmp.eq.s32.totalorder %v710, 1
        %v712 = vsel %vm711, %v704, %v612
        %713 = vst.msk [vmem:[#allocation2] sm:$0xff] %vm614, %v712
        %v714 = vld [vmem:[#allocation2] sm:$0xff]
        %s715 = scalar_lea.vmem %s282, 8
        %v716 = vld [vmem:[%s715] sm:$0xff]
        %v717 = vsel %vm614, %v714, -inf
        %718 = vmax.xlane.f32.xlu0 %v717
        %v719 = vpop.xlane.xlu0 %718
        %v720 = vsub.f32 %v714, %v719
        %v721 = vmul.f32 %v720, 1.442695
        %v722 = vpow.pop %v721
        %v724 = vsel %vm614, %v722, 0
        %726 = vmatprep.subr.mxu0 0.0
        %727 = vmatpush1.msra.mxu0 0.0
        %728 = vmatprep.subr.mxu0 0.0
        %729 = vmatpush1.msra.mxu0 0.0
        %730 = vmatprep.subr.mxu0 0.0
        %731 = vmatpush1.msra.mxu0 0.0
        %732 = vmatprep.subr.mxu0 0.0
        %733 = vmatpush1.msra.mxu0 0.0
        %734 = vmatprep.subr.mxu0 0.0
        %735 = vmatpush1.msra.mxu0 0.0
        %736 = vmatprep.subr.mxu0 0.0
        %737 = vmatpush1.msra.mxu0 0.0
        %738 = vmatprep.subr.mxu0 0.0
        %739 = vmatpush1.msra.mxu0 0.0
        %740 = vmatprep.subr.mxu0 0.0
        %741 = vmatpush1.msra.mxu0 0.0
        %742 = vmatprep.subr.mxu0 0.0
        %743 = vmatpush1.msra.mxu0 0.0
        %744 = vmatprep.subr.mxu0 0.0
        %745 = vmatpush1.msra.mxu0 0.0
        %746 = vmatprep.subr.mxu0 0.0
        %747 = vmatpush1.msra.mxu0 0.0
        %748 = vmatprep.subr.mxu0 0.0
        %749 = vmatpush1.msra.mxu0 0.0
        %750 = vmatprep.subr.mxu0 0.0
        %751 = vmatpush1.msra.mxu0 0.0
        %752 = vmatprep.subr.mxu0 0.0
        %753 = vmatpush1.msra.mxu0 0.0
        %754 = vmatprep.subr.mxu0 0.0
        %755 = vmatpush1.msra.mxu0 0.0
        %756 = vmatprep.subr.mxu0 0.0
        %757 = vmatpush1.msra.mxu0 %v293
        %758 = vmatprep.subr.mxu0 0.0
        %759 = vmatpush2.msra.mxu0 0.0
        %760 = vmatprep.subr.mxu0 0.0
        %761 = vmatpush2.msra.mxu0 0.0
        %762 = vmatprep.subr.mxu0 0.0
        %763 = vmatpush2.msra.mxu0 0.0
        %764 = vmatprep.subr.mxu0 0.0
        %765 = vmatpush2.msra.mxu0 0.0
        %766 = vmatprep.subr.mxu0 0.0
        %767 = vmatpush2.msra.mxu0 0.0
        %768 = vmatprep.subr.mxu0 0.0
        %769 = vmatpush2.msra.mxu0 0.0
        %770 = vmatprep.subr.mxu0 0.0
        %771 = vmatpush2.msra.mxu0 0.0
        %772 = vmatprep.subr.mxu0 0.0
        %773 = vmatpush2.msra.mxu0 0.0
        %774 = vmatprep.subr.mxu0 0.0
        %775 = vmatpush2.msra.mxu0 0.0
        %776 = vmatprep.subr.mxu0 0.0
        %777 = vmatpush2.msra.mxu0 0.0
        %778 = vmatprep.subr.mxu0 0.0
        %779 = vmatpush2.msra.mxu0 0.0
        %780 = vmatprep.subr.mxu0 0.0
        %781 = vmatpush2.msra.mxu0 0.0
        %782 = vmatprep.subr.mxu0 0.0
        %783 = vmatpush2.msra.mxu0 0.0
        %784 = vmatprep.subr.mxu0 0.0
        %785 = vmatpush2.msra.mxu0 0.0
        %786 = vmatprep.subr.mxu0 0.0
        %787 = vmatpush2.msra.mxu0 0.0
        %788 = vmatprep.subr.mxu0 0.0
        %789 = vmatpush2.msra.mxu0 0.0
        %790 = vmatprep.mubr.f32.mxu0 0.0
        %791 = vmatmul.mubr.f32.gmra.mxu0 %v724
        %v792 = vpop.f32.mrf.mxu0
        %v793 = vadd.f32 0.0, %v792
        %v794 = vpop.f32.mrf.mxu0
        %795 = vdwg.mxu0
        %v796 = vadd.f32 %v719, %v698
        %v797 = vlog2.pop %v793
        %v798 = vmul.f32 %v797, 0.6931472
        %v799 = vadd.f32 %v796, %v798
        %v800 = vadd.f32 %v799, %v716
        %s801 = sadd.s32 %s292, 1
        %v802 = vstv %s801
        %vm803 = vcmp.lt.s32.totalorder %v802, %v295
        %v804 = vsel %vm803, 1, 0
        %805 = vset.pattern.permute.xlu0 0
        %806 = vperm.xlu0 %805, %v804
        %v807 = vpop.permute.xlu0 %806
        %vm808 = vcmp.eq.s32.totalorder %v807, 1
        %v809 = vsel %vm808, %v800, %v714
        %810 = vst.msk [vmem:[#allocation2] sm:$0xff] %vm614, %v809
        %v811 = vld [vmem:[#allocation2] sm:$0xff]
        %s812 = scalar_lea.vmem %s282, 16
        %v813 = vld [vmem:[%s812] sm:$0xff]
        %v814 = vsel %vm614, %v811, -inf
        %815 = vmax.xlane.f32.xlu0 %v814
        %v816 = vpop.xlane.xlu0 %815
        %v817 = vsub.f32 %v811, %v816
        %v818 = vmul.f32 %v817, 1.442695
        %v819 = vpow.pop %v818
        %v821 = vsel %vm614, %v819, 0
        %823 = vmatprep.subr.mxu0 0.0
        %824 = vmatpush1.msra.mxu0 0.0
        %825 = vmatprep.subr.mxu0 0.0
        %826 = vmatpush1.msra.mxu0 0.0
        %827 = vmatprep.subr.mxu0 0.0
        %828 = vmatpush1.msra.mxu0 0.0
        %829 = vmatprep.subr.mxu0 0.0
        %830 = vmatpush1.msra.mxu0 0.0
        %831 = vmatprep.subr.mxu0 0.0
        %832 = vmatpush1.msra.mxu0 0.0
        %833 = vmatprep.subr.mxu0 0.0
        %834 = vmatpush1.msra.mxu0 0.0
        %835 = vmatprep.subr.mxu0 0.0
        %836 = vmatpush1.msra.mxu0 0.0
        %837 = vmatprep.subr.mxu0 0.0
        %838 = vmatpush1.msra.mxu0 0.0
        %839 = vmatprep.subr.mxu0 0.0
        %840 = vmatpush1.msra.mxu0 0.0
        %841 = vmatprep.subr.mxu0 0.0
        %842 = vmatpush1.msra.mxu0 0.0
        %843 = vmatprep.subr.mxu0 0.0
        %844 = vmatpush1.msra.mxu0 0.0
        %845 = vmatprep.subr.mxu0 0.0
        %846 = vmatpush1.msra.mxu0 0.0
        %847 = vmatprep.subr.mxu0 0.0
        %848 = vmatpush1.msra.mxu0 0.0
        %849 = vmatprep.subr.mxu0 0.0
        %850 = vmatpush1.msra.mxu0 0.0
        %851 = vmatprep.subr.mxu0 0.0
        %852 = vmatpush1.msra.mxu0 0.0
        %853 = vmatprep.subr.mxu0 0.0
        %854 = vmatpush1.msra.mxu0 %v293
        %855 = vmatprep.subr.mxu0 0.0
        %856 = vmatpush2.msra.mxu0 0.0
        %857 = vmatprep.subr.mxu0 0.0
        %858 = vmatpush2.msra.mxu0 0.0
        %859 = vmatprep.subr.mxu0 0.0
        %860 = vmatpush2.msra.mxu0 0.0
        %861 = vmatprep.subr.mxu0 0.0
        %862 = vmatpush2.msra.mxu0 0.0
        %863 = vmatprep.subr.mxu0 0.0
        %864 = vmatpush2.msra.mxu0 0.0
        %865 = vmatprep.subr.mxu0 0.0
        %866 = vmatpush2.msra.mxu0 0.0
        %867 = vmatprep.subr.mxu0 0.0
        %868 = vmatpush2.msra.mxu0 0.0
        %869 = vmatprep.subr.mxu0 0.0
        %870 = vmatpush2.msra.mxu0 0.0
        %871 = vmatprep.subr.mxu0 0.0
        %872 = vmatpush2.msra.mxu0 0.0
        %873 = vmatprep.subr.mxu0 0.0
        %874 = vmatpush2.msra.mxu0 0.0
        %875 = vmatprep.subr.mxu0 0.0
        %876 = vmatpush2.msra.mxu0 0.0
        %877 = vmatprep.subr.mxu0 0.0
        %878 = vmatpush2.msra.mxu0 0.0
        %879 = vmatprep.subr.mxu0 0.0
        %880 = vmatpush2.msra.mxu0 0.0
        %881 = vmatprep.subr.mxu0 0.0
        %882 = vmatpush2.msra.mxu0 0.0
        %883 = vmatprep.subr.mxu0 0.0
        %884 = vmatpush2.msra.mxu0 0.0
        %885 = vmatprep.subr.mxu0 0.0
        %886 = vmatpush2.msra.mxu0 0.0
        %887 = vmatprep.mubr.f32.mxu0 0.0
        %888 = vmatmul.mubr.f32.gmra.mxu0 %v821
        %v889 = vpop.f32.mrf.mxu0
        %v890 = vadd.f32 0.0, %v889
        %v891 = vpop.f32.mrf.mxu0
        %892 = vdwg.mxu0
        %v893 = vadd.f32 %v816, %v698
        %v894 = vlog2.pop %v890
        %v895 = vmul.f32 %v894, 0.6931472
        %v896 = vadd.f32 %v893, %v895
        %v897 = vadd.f32 %v896, %v813
        %s898 = sadd.s32 %s292, 2
        %v899 = vstv %s898
        %vm900 = vcmp.lt.s32.totalorder %v899, %v295
        %v901 = vsel %vm900, 1, 0
        %902 = vset.pattern.permute.xlu0 0
        %903 = vperm.xlu0 %902, %v901
        %v904 = vpop.permute.xlu0 %903
        %vm905 = vcmp.eq.s32.totalorder %v904, 1
        %v906 = vsel %vm905, %v897, %v811
        %907 = vst.msk [vmem:[#allocation2] sm:$0xff] %vm614, %v906
        %v908 = vld [vmem:[#allocation2] sm:$0xff]
        %s909 = scalar_lea.vmem %s282, 24
        %v910 = vld [vmem:[%s909] sm:$0xff]
        %v911 = vsel %vm614, %v908, -inf
        %912 = vmax.xlane.f32.xlu0 %v911
        %v913 = vpop.xlane.xlu0 %912
        %v914 = vsub.f32 %v908, %v913
        %v915 = vmul.f32 %v914, 1.442695
        %v916 = vpow.pop %v915
        %v918 = vsel %vm614, %v916, 0
        %920 = vmatprep.subr.mxu0 0.0
        %921 = vmatpush1.msra.mxu0 0.0
        %922 = vmatprep.subr.mxu0 0.0
        %923 = vmatpush1.msra.mxu0 0.0
        %924 = vmatprep.subr.mxu0 0.0
        %925 = vmatpush1.msra.mxu0 0.0
        %926 = vmatprep.subr.mxu0 0.0
        %927 = vmatpush1.msra.mxu0 0.0
        %928 = vmatprep.subr.mxu0 0.0
        %929 = vmatpush1.msra.mxu0 0.0
        %930 = vmatprep.subr.mxu0 0.0
        %931 = vmatpush1.msra.mxu0 0.0
        %932 = vmatprep.subr.mxu0 0.0
        %933 = vmatpush1.msra.mxu0 0.0
        %934 = vmatprep.subr.mxu0 0.0
        %935 = vmatpush1.msra.mxu0 0.0
        %936 = vmatprep.subr.mxu0 0.0
        %937 = vmatpush1.msra.mxu0 0.0
        %938 = vmatprep.subr.mxu0 0.0
        %939 = vmatpush1.msra.mxu0 0.0
        %940 = vmatprep.subr.mxu0 0.0
        %941 = vmatpush1.msra.mxu0 0.0
        %942 = vmatprep.subr.mxu0 0.0
        %943 = vmatpush1.msra.mxu0 0.0
        %944 = vmatprep.subr.mxu0 0.0
        %945 = vmatpush1.msra.mxu0 0.0
        %946 = vmatprep.subr.mxu0 0.0
        %947 = vmatpush1.msra.mxu0 0.0
        %948 = vmatprep.subr.mxu0 0.0
        %949 = vmatpush1.msra.mxu0 0.0
        %950 = vmatprep.subr.mxu0 0.0
        %951 = vmatpush1.msra.mxu0 %v293
        %952 = vmatprep.subr.mxu0 0.0
        %953 = vmatpush2.msra.mxu0 0.0
        %954 = vmatprep.subr.mxu0 0.0
        %955 = vmatpush2.msra.mxu0 0.0
        %956 = vmatprep.subr.mxu0 0.0
        %957 = vmatpush2.msra.mxu0 0.0
        %958 = vmatprep.subr.mxu0 0.0
        %959 = vmatpush2.msra.mxu0 0.0
        %960 = vmatprep.subr.mxu0 0.0
        %961 = vmatpush2.msra.mxu0 0.0
        %962 = vmatprep.subr.mxu0 0.0
        %963 = vmatpush2.msra.mxu0 0.0
        %964 = vmatprep.subr.mxu0 0.0
        %965 = vmatpush2.msra.mxu0 0.0
        %966 = vmatprep.subr.mxu0 0.0
        %967 = vmatpush2.msra.mxu0 0.0
        %968 = vmatprep.subr.mxu0 0.0
        %969 = vmatpush2.msra.mxu0 0.0
        %970 = vmatprep.subr.mxu0 0.0
        %971 = vmatpush2.msra.mxu0 0.0
        %972 = vmatprep.subr.mxu0 0.0
        %973 = vmatpush2.msra.mxu0 0.0
        %974 = vmatprep.subr.mxu0 0.0
        %975 = vmatpush2.msra.mxu0 0.0
        %976 = vmatprep.subr.mxu0 0.0
        %977 = vmatpush2.msra.mxu0 0.0
        %978 = vmatprep.subr.mxu0 0.0
        %979 = vmatpush2.msra.mxu0 0.0
        %980 = vmatprep.subr.mxu0 0.0
        %981 = vmatpush2.msra.mxu0 0.0
        %982 = vmatprep.subr.mxu0 0.0
        %983 = vmatpush2.msra.mxu0 0.0
        %984 = vmatprep.mubr.f32.mxu0 0.0
        %985 = vmatmul.mubr.f32.gmra.mxu0 %v918
        %v986 = vpop.f32.mrf.mxu0
        %v987 = vadd.f32 0.0, %v986
        %v988 = vpop.f32.mrf.mxu0
        %989 = vdwg.mxu0
        %v990 = vadd.f32 %v913, %v698
        %v991 = vlog2.pop %v987
        %v992 = vmul.f32 %v991, 0.6931472
        %v993 = vadd.f32 %v990, %v992
        %v994 = vadd.f32 %v993, %v910
        %s995 = sadd.s32 %s292, 3
        %v996 = vstv %s995
        %vm997 = vcmp.lt.s32.totalorder %v996, %v295
        %v998 = vsel %vm997, 1, 0
        %999 = vset.pattern.permute.xlu0 0
        %1000 = vperm.xlu0 %999, %v998
        %v1001 = vpop.permute.xlu0 %1000
        %vm1002 = vcmp.eq.s32.totalorder %v1001, 1
        %v1003 = vsel %vm1002, %v994, %v908
        %1004 = vst.msk [vmem:[#allocation2] sm:$0xff] %vm614, %v1003
      $region52: #{sequence_criteria_crf.1} parent=43 // pred_fallthru
        _
      %p1005 = scmp.eq.s32.totalorder %s22, 1
      // Predicated region
      $region53: #{sequence_criteria_crf.1} parent=43 // pred_check
        %p1006 = pneg %p1005
      $region54: #{sequence_criteria_crf.1} parent=43 // pred_check_branch
        %1008 = sbr.rel (%p1006) target = $region56
      $region55: #{sequence_criteria_crf.1} parent=43 // pred_region
        %v1009 = vld [vmem:[#allocation2] sm:$0xff]
        %v1010 = vld [vmem:[%s5] sm:$0x1]
        %v1012 = vlaneseq
        %v1013 = vshrl.u32 %v1012, 7
        %v1014 = vsub.s32 0, %v1013
        %v1015 = vrot.slane %v1010, %v1014
        %v1017 = vadd.f32 %v1009, %v1015
        %vm1018 = vcmask 64512
        %v1019 = vsel %vm1018, %v1017, -inf
        %1020 = vmax.xlane.f32.xlu0 %v1019
        %v1021 = vpop.xlane.xlu0 %1020
        %v1022 = vsub.f32 %v1017, %v1021
        %v1023 = vmul.f32 %v1022, 1.442695
        %v1024 = vpow.pop %v1023
        %v1025 = vsel %vm1018, %v1024, 0.0
        %1026 = vadd.xlane.f32.xlu0 %v1025
        %v1027 = vpop.xlane.xlu0 %1026
        %v1028 = vlog2.pop %v1027
        %v1029 = vmul.f32 %v1028, 0.6931472
        %v1030 = vadd.f32 %v1021, %v1029
        %vm1031 = vcmask 7168
        %1032 = vst.msk [vmem:[%s291] sm:$0xff] %vm1031, %v1030
      $region56: #{sequence_criteria_crf.1} parent=43 // pred_fallthru
        _
      %p1033 = scmp.lt.s32.totalorder %s21, 0
      %s1034 = scalar_select %p1033, %s21, 0
      %s1035 = smul.addr %s1034, 8
      %s1036 = scalar_lea.vmem %s6, %s1035
      // Predicated region
      $region57: #{sequence_criteria_crf.1} parent=43 // pred_check
        %p1037 = pneg %p185
      $region58: #{sequence_criteria_crf.1} parent=43 // pred_check_branch
        %1039 = sbr.rel (%p1037) target = $region60
      $region59: #{sequence_criteria_crf.1} parent=43 // pred_region
        _
      $region60: #{sequence_criteria_crf.1} parent=43 // pred_fallthru
        _
      // Predicated region
      $region61: #{sequence_criteria_crf.1} parent=43 // pred_check
        %p1040 = pneg %p185
      $region62: #{sequence_criteria_crf.1} parent=43 // pred_check_branch
        %1042 = sbr.rel (%p1040) target = $region64
      $region63: #{sequence_criteria_crf.1} parent=43 // pred_region
        %p1043 = scmp.lt.s32.totalorder %s21, 0
        %s1044 = scalar_select %p1043, %s21, 0
        %s1045 = smul.addr %s1044, 8
        %s1046 = scalar_lea.vmem %s6, %s1045
      $region64: #{sequence_criteria_crf.1} parent=43 // pred_fallthru
        _
    $region44: #{sequence_criteria_crf.1} parent=5 // pred_fallthru
      _
    %p1047 = scmp.le.s32.totalorder 2, %s12
    // Predicated region
    $region65: #{sequence_criteria_crf.1} parent=5 // pred_check
      %p1048 = pneg %p1047
    $region66: #{sequence_criteria_crf.1} parent=5 // pred_check_branch
      %1050 = sbr.rel (%p1048) target = $region68
    $region67: #{sequence_criteria_crf.1} parent=5 // pred_region
      %s1051 = ssub.s32 %s12, 2
    $region68: #{sequence_criteria_crf.1} parent=5 // pred_fallthru
      _
  $region6: #{sequence_criteria_crf.1} parent=0 // loop_footer
    %s16 = sadd.s32 1, %s12
  $region7: #{sequence_criteria_crf.1} parent=0 // loop_footer_branch
    %11 = sbr.rel target = $region3
  $region8: #{sequence_criteria_crf.1} parent=0 // loop_exit
    _

</llo_original>
